<compile_context>
chip_gen: v7x
topology: tpu7x:2x2x1
jax: 0.10.0
libtpu: 0.0.40
codegen_flags: <defaults>
</compile_context>

<pallas_src>
import functools

import jax
import jax.numpy as jnp
from jax.experimental import pallas as pl
from jax.experimental.pallas import tpu as pltpu

LANE = 128       # TPU lane width (last-dim vreg width)
SUBLANE = 8      # f32 sublane width

_VMEM_LIMIT_BYTES = 32 * 1024 * 1024   # safe on all generations (v7x phys = 64 MiB)
_VMEM_TILE_BUDGET = 24 * 1024 * 1024   # budget for per-step tiles (headroom kept)
_SMALL_N_SINGLE_TILE = 2048            # below this many rows: one grid step


def _round_up(n, m):
    return (n + m - 1) // m * m


def decoder_kernel(x_ref, w_ref, b_ref, o_ref):
    """Fused affine + log_softmax on one [TILE_N, in_dim] token tile.

    x_ref: [TILE_N, in_dim]   input dtype (cast to bf16 in-kernel for the MXU)
    w_ref: [in_dim, PAD_OUT]  bf16   folded W1*W2*Wo, zero-padded lanes
    b_ref: [1, PAD_OUT]       f32    folded bias, padded lanes = -1e30
    o_ref: [TILE_N, PAD_OUT]  out dtype; first output_dim columns are valid
    """
    x = x_ref[...].astype(jnp.bfloat16)
    # K = in_dim is intentionally NOT padded: at 32 it fills only 1/8 of the
    # 256-wide v6e/v7x MXU (1/4 of v5e's 128x128), but this kernel is
    # memory-bound, so padding K would only add HBM bytes.  If the encoder
    # hidden dim grows, target multiples of 256 (v6e/v7x) / 128 (v5e).
    logits = jnp.dot(x, w_ref[...], preferred_element_type=jnp.float32)
    logits = logits + b_ref[...]

    # Stable log_softmax over the feature axis (LogSoftmax(dim=1) on 2-D input).
    # Padded columns carry -1e30 -> exp() underflows to 0, never win the max.
    m = jnp.max(logits, axis=-1, keepdims=True)
    z = logits - m
    lse = jnp.log(jnp.sum(jnp.exp(z), axis=-1, keepdims=True))
    o_ref[...] = (z - lse).astype(o_ref.dtype)


def fold_decoder_params(w1_t, b1, w2_t, b2, wo_t, bo, dec_layers):
    """Fold the activation-free Linear chain into one affine map (f32).

    w*_t are stored as [in, out] (already transposed vs. the PyTorch weight).
    Biases may be 1-D (PyTorch style) or [1, dim]; they are reshaped here.
    """
    b1 = jnp.reshape(b1, (1, -1))
    bo = jnp.reshape(bo, (1, -1))
    if dec_layers == 2:
        b2 = jnp.reshape(b2, (1, -1))
        w = w1_t @ w2_t @ wo_t
        b = b1 @ w2_t @ wo_t + b2 @ wo_t + bo
    else:
        w = w1_t @ wo_t
        b = b1 @ wo_t + bo
    return w, b


def _max_rows_for_vmem(in_dim, pad_out, x_itemsize, out_itemsize):
    """Largest token-tile height whose per-step VMEM footprint fits the budget."""
    # Resident (double-buffered) weights + bias.
    fixed = 2 * in_dim * pad_out * 2 + 2 * pad_out * 4
    # Double-buffered input/output tiles + one f32 logits/softmax temporary.
    per_row = 2 * in_dim * x_itemsize + 2 * pad_out * out_itemsize + 2 * pad_out * 4
    avail = max(_VMEM_TILE_BUDGET - fixed, per_row * SUBLANE)
    return max((avail // per_row) // SUBLANE * SUBLANE, SUBLANE)


def _choose_row_tiling(n_rows, tile_n, in_dim, pad_out, x_itemsize, out_itemsize):
    """Pick (tile_rows, num_tiles) minimizing padded-row work and fixed overhead."""
    n_sub = _round_up(n_rows, SUBLANE)
    cap = _max_rows_for_vmem(in_dim, pad_out, x_itemsize, out_itemsize)
    if n_sub <= min(_SMALL_N_SINGLE_TILE, cap):
        return n_sub, 1                                   # small-N fast path
    tile = max(min(_round_up(tile_n, SUBLANE), cap), SUBLANE)
    num_tiles = pl.cdiv(n_sub, tile)
    if num_tiles % 2:
        num_tiles += 1                                    # balanced pair(s) for v7x megacore
    tn = _round_up(pl.cdiv(n_sub, num_tiles), SUBLANE)
    num_tiles = pl.cdiv(n_sub, tn)                        # re-derive: no empty tail block
    return tn, num_tiles


@functools.partial(
    jax.jit, static_argnames=("dec_layers", "tile_n", "out_dtype", "slice_output"))
def decoder_forward(x, w1_t, b1, w2_t, b2, wo_t, bo, *, dec_layers=2, tile_n=1024,
                    out_dtype=jnp.float32, slice_output=True):
    """x: [N, in_dim] flattened tokens (in_dim = enc_hid_dim or emb_dim).

    slice_output=False returns the lane-padded [N, pad_out] slab (first
    output_dim columns valid), letting the consumer skip the extra HBM pass
    of the column slice.
    """
    N, in_dim = x.shape
    output_dim = wo_t.shape[1]
    out_itemsize = jnp.dtype(out_dtype).itemsize

    # --- fold the Linear chain into one affine map (done once, in f32) -------
    w_fused, b_fused = fold_decoder_params(w1_t, b1, w2_t, b2, wo_t, bo, dec_layers)

    # --- lane-dense output: pad feature axis to a multiple of 128 lanes ------
    pad_out = _round_up(max(output_dim, LANE), LANE)
    w_bf16 = (jnp.zeros((in_dim, pad_out), jnp.bfloat16)
              .at[:, :output_dim].set(w_fused.astype(jnp.bfloat16)))
    b_pad = (jnp.full((1, pad_out), -1e30, jnp.float32)
             .at[:, :output_dim].set(b_fused))

    # --- token-axis tiling (no row padding; Pallas masks the partial block) --
    tn, num_tiles = _choose_row_tiling(N, tile_n, in_dim, pad_out,
                                       x.dtype.itemsize, out_itemsize)

    cost = pl.CostEstimate(
        flops=2 * N * in_dim * pad_out,
        transcendentals=N * (pad_out + 1),          # exp per element + log per row
        bytes_accessed=(N * in_dim * x.dtype.itemsize
                        + in_dim * pad_out * 2 + pad_out * 4
                        + N * pad_out * out_itemsize),
    )

    out_pad = pl.pallas_call(
        decoder_kernel,
        out_shape=jax.ShapeDtypeStruct((N, pad_out), out_dtype),
        grid=(num_tiles,),
        in_specs=[
            pl.BlockSpec((tn, in_dim), lambda i: (i, 0)),        # token tile
            pl.BlockSpec((in_dim, pad_out), lambda i: (0, 0)),   # resident weights
            pl.BlockSpec((1, pad_out), lambda i: (0, 0)),        # resident bias
        ],
        out_specs=pl.BlockSpec((tn, pad_out), lambda i: (i, 0)),
        compiler_params=pltpu.CompilerParams(
            dimension_semantics=("parallel",),                   # megacore on v7x
            vmem_limit_bytes=_VMEM_LIMIT_BYTES,
        ),
        cost_estimate=cost,
    )(x, w_bf16, b_pad)

    if slice_output:
        return out_pad[:, :output_dim]
    return out_pad


def init_linear(key, in_dim, out_dim):
    """Deterministic PyTorch-style Linear init: U(-1/sqrt(in), 1/sqrt(in))."""
    kw, kb = jax.random.split(key)
    bound = 1.0 / jnp.sqrt(jnp.float32(in_dim))
    # Stored directly as [in, out] (i.e. W^T) so no transpose is needed later.
    w_t = jax.random.uniform(kw, (in_dim, out_dim), jnp.float32, -bound, bound)
    b = jax.random.uniform(kb, (1, out_dim), jnp.float32, -bound, bound)
    return w_t, b


if __name__ == "__main__":
    # Module hyperparameters (small, consistent with the forward pass).
    enc_hid_dim = 32
    dec_hid_dim = 32
    output_dim = 16
    dec_layers = 2                  # exercises hidden_layer2
    batch, seq_len = 2, 300
    N = batch * seq_len             # 600 flattened tokens -> single 600-row tile

    key = jax.random.PRNGKey(0)
    kx, kx2, k1, k2, k3 = jax.random.split(key, 5)

    x = jax.random.normal(kx, (N, enc_hid_dim), jnp.float32)
    w1_t, b1 = init_linear(k1, enc_hid_dim, dec_hid_dim)
    w2_t, b2 = init_linear(k2, dec_hid_dim, dec_hid_dim)
    wo_t, bo = init_linear(k3, dec_hid_dim, output_dim)

    def ref_forward(xi, layers):
        h = xi @ w1_t + b1
        if layers == 2:
            h = h @ w2_t + b2
        return jax.nn.log_softmax(h @ wo_t + bo, axis=-1)

    # --- main path: 2 layers, f32 output, small-N single tile ----------------
    out = decoder_forward(x, w1_t, b1, w2_t, b2, wo_t, bo, dec_layers=dec_layers)
    out = jax.block_until_ready(out)
    assert out.shape == (N, output_dim)
    assert out.dtype == jnp.float32

    # Reference 1: same folded/bf16 math path in plain JAX (tight kernel check).
    w_f, b_f = fold_decoder_params(w1_t, b1, w2_t, b2, wo_t, bo, dec_layers)
    logits_bf = jnp.dot(x.astype(jnp.bfloat16), w_f.astype(jnp.bfloat16),
                        preferred_element_type=jnp.float32) + b_f
    ref_bf = jax.nn.log_softmax(logits_bf, axis=-1)
    assert jnp.allclose(out, ref_bf, atol=1e-4, rtol=1e-4), "mismatch vs bf16 reference"

    # Reference 2: original (unfused, full-f32) module semantics.  Loose
    # tolerance: weight folding reassociates f32 rounding and MXU operands are bf16.
    assert jnp.allclose(out, ref_forward(x, 2), atol=5e-2, rtol=0.0), \
        "mismatch vs f32 reference"

    # --- multi-tile path with a non-divisible row count (boundary masking) ---
    N2 = 2500
    x2 = jax.random.normal(kx2, (N2, enc_hid_dim), jnp.float32)
    out2 = decoder_forward(x2, w1_t, b1, w2_t, b2, wo_t, bo,
                           dec_layers=2, tile_n=1024)
    out2 = jax.block_until_ready(out2)
    assert out2.shape == (N2, output_dim)
    assert jnp.allclose(out2, ref_forward(x2, 2), atol=5e-2, rtol=0.0), \
        "mismatch vs f32 reference (multi-tile)"

    # --- bf16 output option (halves the dominant HBM store stream) -----------
    out_bf16 = decoder_forward(x, w1_t, b1, w2_t, b2, wo_t, bo,
                               dec_layers=2, out_dtype=jnp.bfloat16)
    out_bf16 = jax.block_until_ready(out_bf16)
    assert out_bf16.dtype == jnp.bfloat16
    assert jnp.allclose(out_bf16.astype(jnp.float32), out, atol=1e-1, rtol=0.0), \
        "bf16 output mismatch"

    # --- single-hidden-layer variant ------------------------------------------
    out1 = decoder_forward(x, w1_t, b1, w2_t, b2, wo_t, bo, dec_layers=1)
    out1 = jax.block_until_ready(out1)
    assert jnp.allclose(out1, ref_forward(x, 1), atol=5e-2, rtol=0.0), \
        "mismatch vs f32 reference (dec_layers=1)"

    print("KERNEL_OK")
</pallas_src>

<mosaic_0001>
module attributes {stable_mosaic.version = 11 : i64} {
  func.func @decoder_kernel(%arg0: i32, %arg1: memref<600x32xf32, #tpu.memory_space<vmem>>, %arg2: memref<32x128xbf16, #tpu.memory_space<vmem>>, %arg3: memref<1x128xf32, #tpu.memory_space<vmem>>, %arg4: memref<600x128xf32, #tpu.memory_space<vmem>>) attributes {dimension_semantics = [#tpu.dimension_semantics<parallel>], iteration_bounds = array<i64: 1>, scalar_prefetch = 0 : i64, scratch_operands = 0 : i64, tpu.core_type = #tpu.core_type<tc>, window_params = [{transform_indices = @transform_0, window_bounds = array<i64: 600, 32>}, {pipeline_mode = #tpu.pipeline_mode<synchronous>, transform_indices = @transform_1, window_bounds = array<i64: 32, 128>}, {pipeline_mode = #tpu.pipeline_mode<synchronous>, transform_indices = @transform_2, window_bounds = array<i64: 1, 128>}, {transform_indices = @transform_3, window_bounds = array<i64: 600, 128>}]} {
    %c0 = arith.constant 0 : index
    %c0_0 = arith.constant 0 : index
    %0 = vector.load %arg1[%c0, %c0_0] : memref<600x32xf32, #tpu.memory_space<vmem>>, vector<600x32xf32>
    %1 = arith.truncf %0 : vector<600x32xf32> to vector<600x32xbf16>
    %c0_1 = arith.constant 0 : index
    %c0_2 = arith.constant 0 : index
    %2 = vector.load %arg2[%c0_1, %c0_2] : memref<32x128xbf16, #tpu.memory_space<vmem>>, vector<32x128xbf16>
    %cst = arith.constant dense<0.000000e+00> : vector<600x128xf32>
    %3 = tpu.matmul %1, %2, %cst {dimension_numbers = #tpu.dot_dimension_numbers<[1], [0], [0], [1], [0, 0, 1, 1], [], []>} : vector<600x32xbf16>, vector<32x128xbf16>, vector<600x128xf32> -> vector<600x128xf32>
    %c0_3 = arith.constant 0 : index
    %c0_4 = arith.constant 0 : index
    %4 = vector.load %arg3[%c0_3, %c0_4] : memref<1x128xf32, #tpu.memory_space<vmem>>, vector<1x128xf32>
    %5 = vector.broadcast %4 : vector<1x128xf32> to vector<600x128xf32>
    %6 = arith.addf %3, %5 : vector<600x128xf32>
    %cst_5 = arith.constant dense<0xFF800000> : vector<600xf32>
    %7 = vector.multi_reduction <maximumf>, %6, %cst_5 [1] : vector<600x128xf32> to vector<600xf32>
    %8 = vector.shape_cast %7 : vector<600xf32> to vector<600x1xf32>
    %9 = vector.broadcast %8 : vector<600x1xf32> to vector<600x128xf32>
    %10 = arith.subf %6, %9 : vector<600x128xf32>
    %11 = math.exp %10 : vector<600x128xf32>
    %cst_6 = arith.constant dense<0.000000e+00> : vector<600xf32>
    %12 = vector.multi_reduction <add>, %11, %cst_6 [1] : vector<600x128xf32> to vector<600xf32>
    %13 = vector.shape_cast %12 : vector<600xf32> to vector<600x1xf32>
    %14 = math.log %13 : vector<600x1xf32>
    %15 = vector.broadcast %14 : vector<600x1xf32> to vector<600x128xf32>
    %16 = arith.subf %10, %15 : vector<600x128xf32>
    %c0_7 = arith.constant 0 : index
    %c0_8 = arith.constant 0 : index
    %17 = vector.load %arg4[%c0_7, %c0_8] : memref<600x128xf32, #tpu.memory_space<vmem>>, vector<600x128xf32>
    tpu.vector_store %arg4[%c0_7, %c0_8], %16 {strides = array<i32>} : memref<600x128xf32, #tpu.memory_space<vmem>>, vector<600x128xf32>,
    return
  }
  func.func @transform_0(%arg0: i32) -> (i32, i32) {
    %c0_i32 = arith.constant 0 : i32
    %c0_i32_0 = arith.constant 0 : i32
    return %arg0, %c0_i32 : i32, i32
  }
  func.func @transform_1(%arg0: i32) -> (i32, i32) {
    %c0_i32 = arith.constant 0 : i32
    %c0_i32_0 = arith.constant 0 : i32
    %c0_i32_1 = arith.constant 0 : i32
    return %c0_i32, %c0_i32_0 : i32, i32
  }
  func.func @transform_2(%arg0: i32) -> (i32, i32) {
    %c0_i32 = arith.constant 0 : i32
    %c0_i32_0 = arith.constant 0 : i32
    %c0_i32_1 = arith.constant 0 : i32
    return %c0_i32, %c0_i32_0 : i32, i32
  }
  func.func @transform_3(%arg0: i32) -> (i32, i32) {
    %c0_i32 = arith.constant 0 : i32
    %c0_i32_0 = arith.constant 0 : i32
    return %arg0, %c0_i32 : i32, i32
  }
}

</mosaic_0001>

<llo_original>
// kernel: decoder_forward.1
$region0: #{decoder_forward.1}
  #allocation0 [shape = 'u32[]', space=smem, size = 0x4, offset = 0x4, fixed_abs, tag = 'smem constant byte address 0x4 - core index']
  #allocation1 [shape = 'u32[144,128]{1,0:T(1,128)}', space=vmem, size = 0x12000, scoped, tag = 'internal scratch']
  %s0 = inlined_call_operand.vmem [shape: f32[600,32], index: 0, kind: input, shape index: {}]
  %s1 = inlined_call_operand.vmem [shape: bf16[32,128], index: 1, kind: input, shape index: {}]
  %s2 = inlined_call_operand.vmem [shape: f32[1,128], index: 2, kind: input, shape index: {}]
  %s3 = inlined_call_operand.vmem [shape: f32[600,128], index: 3, kind: output, shape index: {}]
  %s4 = sld [smem:[#allocation0]]
  $region22: #{decoder_forward.1} parent=0
    _
  %s6 = ssub.s32 1, %s4
  %s7 = scalar_select 0, %s6, %s4
  // Predicated region
  $region2: #{decoder_forward.1} parent=0 // pred_check
    _
  $region3: #{decoder_forward.1} parent=0 // pred_check_branch
    %9 = sbr.rel (0) target = $region5
  $region4: #{decoder_forward.1} parent=0 // pred_region
    _
  $region5: #{decoder_forward.1} parent=0 // pred_fallthru
    _
  // Predicated region
  $region6: #{decoder_forward.1} parent=0 // pred_check
    _
  $region7: #{decoder_forward.1} parent=0 // pred_check_branch
    %11 = sbr.rel (0) target = $region9
  $region8: #{decoder_forward.1} parent=0 // pred_region
    _
  $region9: #{decoder_forward.1} parent=0 // pred_fallthru
    _
  // Predicated region
  $region10: #{decoder_forward.1} parent=0 // pred_check
    _
  $region11: #{decoder_forward.1} parent=0 // pred_check_branch
    %13 = sbr.rel (0) target = $region13
  $region12: #{decoder_forward.1} parent=0 // pred_region
    _
  $region13: #{decoder_forward.1} parent=0 // pred_fallthru
    _
  %v15 = vld [vmem:[%s0] sm:$0xff]
  %v16 = vld [vmem:[%s0 + $0x8] sm:$0xff]
  %v17 = vld [vmem:[%s0 + $0x10] sm:$0xff]
  %v18 = vld [vmem:[%s0 + $0x18] sm:$0xff]
  %v19 = vld [vmem:[%s0 + $0x20] sm:$0xff]
  %v20 = vld [vmem:[%s0 + $0x28] sm:$0xff]
  %v21 = vld [vmem:[%s0 + $0x30] sm:$0xff]
  %v22 = vld [vmem:[%s0 + $0x38] sm:$0xff]
  %v23 = vld [vmem:[%s0 + $0x40] sm:$0xff]
  %v24 = vld [vmem:[%s0 + $0x48] sm:$0xff]
  %v25 = vld [vmem:[%s0 + $0x50] sm:$0xff]
  %v26 = vld [vmem:[%s0 + $0x58] sm:$0xff]
  %v27 = vld [vmem:[%s0 + $0x60] sm:$0xff]
  %v28 = vld [vmem:[%s0 + $0x68] sm:$0xff]
  %v29 = vld [vmem:[%s0 + $0x70] sm:$0xff]
  %v30 = vld [vmem:[%s0 + $0x78] sm:$0xff]
  %v31 = vld [vmem:[%s0 + $0x80] sm:$0xff]
  %v32 = vld [vmem:[%s0 + $0x88] sm:$0xff]
  %v33 = vld [vmem:[%s0 + $0x90] sm:$0xff]
  %v34 = vld [vmem:[%s0 + $0x98] sm:$0xff]
  %v35 = vld [vmem:[%s0 + $0xa0] sm:$0xff]
  %v36 = vld [vmem:[%s0 + $0xa8] sm:$0xff]
  %v37 = vld [vmem:[%s0 + $0xb0] sm:$0xff]
  %v38 = vld [vmem:[%s0 + $0xb8] sm:$0xff]
  %v39 = vld [vmem:[%s0 + $0xc0] sm:$0xff]
  %v40 = vld [vmem:[%s0 + $0xc8] sm:$0xff]
  %v41 = vld [vmem:[%s0 + $0xd0] sm:$0xff]
  %v42 = vld [vmem:[%s0 + $0xd8] sm:$0xff]
  %v43 = vld [vmem:[%s0 + $0xe0] sm:$0xff]
  %v44 = vld [vmem:[%s0 + $0xe8] sm:$0xff]
  %v45 = vld [vmem:[%s0 + $0xf0] sm:$0xff]
  %v46 = vld [vmem:[%s0 + $0xf8] sm:$0xff]
  %v47 = vld [vmem:[%s0 + $0x100] sm:$0xff]
  %v48 = vld [vmem:[%s0 + $0x108] sm:$0xff]
  %v49 = vld [vmem:[%s0 + $0x110] sm:$0xff]
  %v50 = vld [vmem:[%s0 + $0x118] sm:$0xff]
  %v51 = vld [vmem:[%s0 + $0x120] sm:$0xff]
  %v52 = vld [vmem:[%s0 + $0x128] sm:$0xff]
  %v53 = vld [vmem:[%s0 + $0x130] sm:$0xff]
  %v54 = vld [vmem:[%s0 + $0x138] sm:$0xff]
  %v55 = vld [vmem:[%s0 + $0x140] sm:$0xff]
  %v56 = vld [vmem:[%s0 + $0x148] sm:$0xff]
  %v57 = vld [vmem:[%s0 + $0x150] sm:$0xff]
  %v58 = vld [vmem:[%s0 + $0x158] sm:$0xff]
  %v59 = vld [vmem:[%s0 + $0x160] sm:$0xff]
  %v60 = vld [vmem:[%s0 + $0x168] sm:$0xff]
  %v61 = vld [vmem:[%s0 + $0x170] sm:$0xff]
  %v62 = vld [vmem:[%s0 + $0x178] sm:$0xff]
  %v63 = vld [vmem:[%s0 + $0x180] sm:$0xff]
  %v64 = vld [vmem:[%s0 + $0x188] sm:$0xff]
  %v65 = vld [vmem:[%s0 + $0x190] sm:$0xff]
  %v66 = vld [vmem:[%s0 + $0x198] sm:$0xff]
  %v67 = vld [vmem:[%s0 + $0x1a0] sm:$0xff]
  %v68 = vld [vmem:[%s0 + $0x1a8] sm:$0xff]
  %v69 = vld [vmem:[%s0 + $0x1b0] sm:$0xff]
  %v70 = vld [vmem:[%s0 + $0x1b8] sm:$0xff]
  %v71 = vld [vmem:[%s0 + $0x1c0] sm:$0xff]
  %v72 = vld [vmem:[%s0 + $0x1c8] sm:$0xff]
  %v73 = vld [vmem:[%s0 + $0x1d0] sm:$0xff]
  %v74 = vld [vmem:[%s0 + $0x1d8] sm:$0xff]
  %v75 = vld [vmem:[%s0 + $0x1e0] sm:$0xff]
  %v76 = vld [vmem:[%s0 + $0x1e8] sm:$0xff]
  %v77 = vld [vmem:[%s0 + $0x1f0] sm:$0xff]
  %v78 = vld [vmem:[%s0 + $0x1f8] sm:$0xff]
  %v79 = vld [vmem:[%s0 + $0x200] sm:$0xff]
  %v80 = vld [vmem:[%s0 + $0x208] sm:$0xff]
  %v81 = vld [vmem:[%s0 + $0x210] sm:$0xff]
  %v82 = vld [vmem:[%s0 + $0x218] sm:$0xff]
  %v83 = vld [vmem:[%s0 + $0x220] sm:$0xff]
  %v84 = vld [vmem:[%s0 + $0x228] sm:$0xff]
  %v85 = vld [vmem:[%s0 + $0x230] sm:$0xff]
  %v86 = vld [vmem:[%s0 + $0x238] sm:$0xff]
  %v87 = vld [vmem:[%s0 + $0x240] sm:$0xff]
  %v88 = vld [vmem:[%s0 + $0x248] sm:$0xff]
  %v89 = vld [vmem:[%s0 + $0x250] sm:$0xff]
  %v90 = vpack.c.bf16 %v16, %v15
  %v91 = vpack.c.bf16 %v18, %v17
  %v92 = vpack.c.bf16 %v20, %v19
  %v93 = vpack.c.bf16 %v22, %v21
  %v94 = vpack.c.bf16 %v24, %v23
  %v95 = vpack.c.bf16 %v26, %v25
  %v96 = vpack.c.bf16 %v28, %v27
  %v97 = vpack.c.bf16 %v30, %v29
  %v98 = vpack.c.bf16 %v32, %v31
  %v99 = vpack.c.bf16 %v34, %v33
  %v100 = vpack.c.bf16 %v36, %v35
  %v101 = vpack.c.bf16 %v38, %v37
  %v102 = vpack.c.bf16 %v40, %v39
  %v103 = vpack.c.bf16 %v42, %v41
  %v104 = vpack.c.bf16 %v44, %v43
  %v105 = vpack.c.bf16 %v46, %v45
  %v106 = vpack.c.bf16 %v48, %v47
  %v107 = vpack.c.bf16 %v50, %v49
  %v108 = vpack.c.bf16 %v52, %v51
  %v109 = vpack.c.bf16 %v54, %v53
  %v110 = vpack.c.bf16 %v56, %v55
  %v111 = vpack.c.bf16 %v58, %v57
  %v112 = vpack.c.bf16 %v60, %v59
  %v113 = vpack.c.bf16 %v62, %v61
  %v114 = vpack.c.bf16 %v64, %v63
  %v115 = vpack.c.bf16 %v66, %v65
  %v116 = vpack.c.bf16 %v68, %v67
  %v117 = vpack.c.bf16 %v70, %v69
  %v118 = vpack.c.bf16 %v72, %v71
  %v119 = vpack.c.bf16 %v74, %v73
  %v120 = vpack.c.bf16 %v76, %v75
  %v121 = vpack.c.bf16 %v78, %v77
  %v122 = vpack.c.bf16 %v80, %v79
  %v123 = vpack.c.bf16 %v82, %v81
  %v124 = vpack.c.bf16 %v84, %v83
  %v125 = vpack.c.bf16 %v86, %v85
  %v126 = vpack.c.bf16 %v88, %v87
  %v127 = vpack.c.bf16 %v89, %v89
  %v128 = vld [vmem:[%s1] sm:$0xf]
  %v129 = vld [vmem:[%s1 + $0x4] sm:$0xf]
  %v130 = vld [vmem:[%s1 + $0x8] sm:$0xf]
  %v131 = vld [vmem:[%s1 + $0xc] sm:$0xf]
  %v132 = vld [vmem:[%s2] sm:$0x1]
  %v134 = vlaneseq
  %v135 = vshrl.u32 %v134, 7
  %v136 = vsub.s32 0, %v135
  %v137 = vrot.slane %v132, %v136
  %v143 = vunpack.c.l.b16 %v128
  %v144 = vunpack.c.l.b16 %v129
  %v145 = vunpack.c.l.b16 %v130
  %v146 = vunpack.c.l.b16 %v131
  %v147 = vpack.c.b16 %v144, %v143
  %v148 = vpack.c.b16 %v146, %v145
  %vm151 = vcmask 261120
  %v153 = vsel %vm151, %v90, 0
  %v156 = vsel %vm151, %v91, 0
  %v159 = vsel %vm151, %v92, 0
  %v162 = vsel %vm151, %v93, 0
  %v165 = vsel %vm151, %v94, 0
  %v168 = vsel %vm151, %v95, 0
  %v171 = vsel %vm151, %v96, 0
  %v174 = vsel %vm151, %v97, 0
  %v177 = vsel %vm151, %v98, 0
  %v180 = vsel %vm151, %v99, 0
  %v183 = vsel %vm151, %v100, 0
  %v186 = vsel %vm151, %v101, 0
  %v189 = vsel %vm151, %v102, 0
  %v192 = vsel %vm151, %v103, 0
  %v195 = vsel %vm151, %v104, 0
  %v198 = vsel %vm151, %v105, 0
  %v201 = vsel %vm151, %v106, 0
  %v204 = vsel %vm151, %v107, 0
  %v207 = vsel %vm151, %v108, 0
  %v210 = vsel %vm151, %v109, 0
  %v213 = vsel %vm151, %v110, 0
  %v216 = vsel %vm151, %v111, 0
  %v219 = vsel %vm151, %v112, 0
  %v222 = vsel %vm151, %v113, 0
  %v225 = vsel %vm151, %v114, 0
  %v228 = vsel %vm151, %v115, 0
  %v231 = vsel %vm151, %v116, 0
  %v234 = vsel %vm151, %v117, 0
  %v237 = vsel %vm151, %v118, 0
  %v240 = vsel %vm151, %v119, 0
  %v243 = vsel %vm151, %v120, 0
  %v246 = vsel %vm151, %v121, 0
  %v249 = vsel %vm151, %v122, 0
  %v252 = vsel %vm151, %v123, 0
  %v255 = vsel %vm151, %v124, 0
  %v258 = vsel %vm151, %v125, 0
  %v261 = vsel %vm151, %v126, 0
  %v264 = vsel %vm151, %v127, 0
  %266 = vmatprep.subr.bf16.mxu0 0
  %267 = vmatpush1.bf16.msra.mxu0 %v147
  %268 = vmatprep.subr.bf16.mxu0 0
  %269 = vmatpush1.bf16.msra.mxu0 %v148
  %270 = vmatprep.subr.bf16.mxu0 0
  %271 = vmatpush1.bf16.msra.mxu0 0
  %272 = vmatprep.subr.bf16.mxu0 0
  %273 = vmatpush1.bf16.msra.mxu0 0
  %274 = vmatprep.subr.bf16.mxu0 0
  %275 = vmatpush1.bf16.msra.mxu0 0
  %276 = vmatprep.subr.bf16.mxu0 0
  %277 = vmatpush1.bf16.msra.mxu0 0
  %278 = vmatprep.subr.bf16.mxu0 0
  %279 = vmatpush1.bf16.msra.mxu0 0
  %280 = vmatprep.subr.bf16.mxu0 0
  %281 = vmatpush1.bf16.msra.mxu0 0
  %282 = vmatprep.subr.bf16.mxu0 0
  %283 = vmatpush1.bf16.msra.mxu0 0
  %284 = vmatprep.subr.bf16.mxu0 0
  %285 = vmatpush1.bf16.msra.mxu0 0
  %286 = vmatprep.subr.bf16.mxu0 0
  %287 = vmatpush1.bf16.msra.mxu0 0
  %288 = vmatprep.subr.bf16.mxu0 0
  %289 = vmatpush1.bf16.msra.mxu0 0
  %290 = vmatprep.subr.bf16.mxu0 0
  %291 = vmatpush1.bf16.msra.mxu0 0
  %292 = vmatprep.subr.bf16.mxu0 0
  %293 = vmatpush1.bf16.msra.mxu0 0
  %294 = vmatprep.subr.bf16.mxu0 0
  %295 = vmatpush1.bf16.msra.mxu0 0
  %296 = vmatprep.subr.bf16.mxu0 0
  %297 = vmatpush1.bf16.msra.mxu0 0
  %298 = vmatprep.mubr.bf16.mxu0 0
  %299 = vmatmul.mubr.bf16.gmra.mrb[0].mxu0 %v153
  %v300 = vpop.f32.mrb[0].mxu0
  %v301 = vadd.f32 %v137, %v300
  %v302 = vpop.f32.mrb[0].mxu0
  %v303 = vpop.f32.mrb[0].mxu0
  %v304 = vadd.f32 %v137, %v303
  %v305 = vpop.f32.mrb[0].mxu0
  %306 = vmatprep.mubr.bf16.mxu0 0
  %307 = vmatmul.mubr.bf16.gmra.mrb[0].mxu0 %v156
  %v308 = vpop.f32.mrb[0].mxu0
  %v309 = vadd.f32 %v137, %v308
  %v310 = vpop.f32.mrb[0].mxu0
  %v311 = vpop.f32.mrb[0].mxu0
  %v312 = vadd.f32 %v137, %v311
  %v313 = vpop.f32.mrb[0].mxu0
  %314 = vmatprep.mubr.bf16.mxu0 0
  %315 = vmatmul.mubr.bf16.gmra.mrb[0].mxu0 %v159
  %v316 = vpop.f32.mrb[0].mxu0
  %v317 = vadd.f32 %v137, %v316
  %v318 = vpop.f32.mrb[0].mxu0
  %v319 = vpop.f32.mrb[0].mxu0
  %v320 = vadd.f32 %v137, %v319
  %v321 = vpop.f32.mrb[0].mxu0
  %322 = vmatprep.mubr.bf16.mxu0 0
  %323 = vmatmul.mubr.bf16.gmra.mrb[0].mxu0 %v162
  %v324 = vpop.f32.mrb[0].mxu0
  %v325 = vadd.f32 %v137, %v324
  %v326 = vpop.f32.mrb[0].mxu0
  %v327 = vpop.f32.mrb[0].mxu0
  %v328 = vadd.f32 %v137, %v327
  %v329 = vpop.f32.mrb[0].mxu0
  %330 = vmatprep.mubr.bf16.mxu0 0
  %331 = vmatmul.mubr.bf16.gmra.mrb[0].mxu0 %v165
  %v332 = vpop.f32.mrb[0].mxu0
  %v333 = vadd.f32 %v137, %v332
  %v334 = vpop.f32.mrb[0].mxu0
  %v335 = vpop.f32.mrb[0].mxu0
  %v336 = vadd.f32 %v137, %v335
  %v337 = vpop.f32.mrb[0].mxu0
  %338 = vmatprep.mubr.bf16.mxu0 0
  %339 = vmatmul.mubr.bf16.gmra.mrb[0].mxu0 %v168
  %v340 = vpop.f32.mrb[0].mxu0
  %v341 = vadd.f32 %v137, %v340
  %v342 = vpop.f32.mrb[0].mxu0
  %v343 = vpop.f32.mrb[0].mxu0
  %v344 = vadd.f32 %v137, %v343
  %v345 = vpop.f32.mrb[0].mxu0
  %346 = vmatprep.mubr.bf16.mxu0 0
  %347 = vmatmul.mubr.bf16.gmra.mrb[0].mxu0 %v171
  %v348 = vpop.f32.mrb[0].mxu0
  %v349 = vadd.f32 %v137, %v348
  %v350 = vpop.f32.mrb[0].mxu0
  %v351 = vpop.f32.mrb[0].mxu0
  %v352 = vadd.f32 %v137, %v351
  %v353 = vpop.f32.mrb[0].mxu0
  %354 = vmatprep.mubr.bf16.mxu0 0
  %355 = vmatmul.mubr.bf16.gmra.mrb[0].mxu0 %v174
  %v356 = vpop.f32.mrb[0].mxu0
  %v357 = vadd.f32 %v137, %v356
  %v358 = vpop.f32.mrb[0].mxu0
  %v359 = vpop.f32.mrb[0].mxu0
  %v360 = vadd.f32 %v137, %v359
  %v361 = vpop.f32.mrb[0].mxu0
  %362 = vmatprep.mubr.bf16.mxu0 0
  %363 = vmatmul.mubr.bf16.gmra.mrb[0].mxu0 %v177
  %v364 = vpop.f32.mrb[0].mxu0
  %v365 = vadd.f32 %v137, %v364
  %v366 = vpop.f32.mrb[0].mxu0
  %v367 = vpop.f32.mrb[0].mxu0
  %v368 = vadd.f32 %v137, %v367
  %v369 = vpop.f32.mrb[0].mxu0
  %370 = vmatprep.mubr.bf16.mxu0 0
  %371 = vmatmul.mubr.bf16.gmra.mrb[0].mxu0 %v180
  %v372 = vpop.f32.mrb[0].mxu0
  %v373 = vadd.f32 %v137, %v372
  %v374 = vpop.f32.mrb[0].mxu0
  %v375 = vpop.f32.mrb[0].mxu0
  %v376 = vadd.f32 %v137, %v375
  %v377 = vpop.f32.mrb[0].mxu0
  %378 = vmatprep.mubr.bf16.mxu0 0
  %379 = vmatmul.mubr.bf16.gmra.mrb[0].mxu0 %v183
  %v380 = vpop.f32.mrb[0].mxu0
  %v381 = vadd.f32 %v137, %v380
  %v382 = vpop.f32.mrb[0].mxu0
  %v383 = vpop.f32.mrb[0].mxu0
  %v384 = vadd.f32 %v137, %v383
  %v385 = vpop.f32.mrb[0].mxu0
  %386 = vmatprep.mubr.bf16.mxu0 0
  %387 = vmatmul.mubr.bf16.gmra.mrb[0].mxu0 %v186
  %v388 = vpop.f32.mrb[0].mxu0
  %v389 = vadd.f32 %v137, %v388
  %v390 = vpop.f32.mrb[0].mxu0
  %v391 = vpop.f32.mrb[0].mxu0
  %v392 = vadd.f32 %v137, %v391
  %v393 = vpop.f32.mrb[0].mxu0
  %394 = vmatprep.mubr.bf16.mxu0 0
  %395 = vmatmul.mubr.bf16.gmra.mrb[0].mxu0 %v189
  %v396 = vpop.f32.mrb[0].mxu0
  %v397 = vadd.f32 %v137, %v396
  %v398 = vpop.f32.mrb[0].mxu0
  %v399 = vpop.f32.mrb[0].mxu0
  %v400 = vadd.f32 %v137, %v399
  %v401 = vpop.f32.mrb[0].mxu0
  %402 = vmatprep.mubr.bf16.mxu0 0
  %403 = vmatmul.mubr.bf16.gmra.mrb[0].mxu0 %v192
  %v404 = vpop.f32.mrb[0].mxu0
  %v405 = vadd.f32 %v137, %v404
  %v406 = vpop.f32.mrb[0].mxu0
  %v407 = vpop.f32.mrb[0].mxu0
  %v408 = vadd.f32 %v137, %v407
  %v409 = vpop.f32.mrb[0].mxu0
  %410 = vmatprep.mubr.bf16.mxu0 0
  %411 = vmatmul.mubr.bf16.gmra.mrb[0].mxu0 %v195
  %v412 = vpop.f32.mrb[0].mxu0
  %v413 = vadd.f32 %v137, %v412
  %v414 = vpop.f32.mrb[0].mxu0
  %v415 = vpop.f32.mrb[0].mxu0
  %v416 = vadd.f32 %v137, %v415
  %v417 = vpop.f32.mrb[0].mxu0
  %418 = vmatprep.mubr.bf16.mxu0 0
  %419 = vmatmul.mubr.bf16.gmra.mrb[0].mxu0 %v198
  %v420 = vpop.f32.mrb[0].mxu0
  %v421 = vadd.f32 %v137, %v420
  %v422 = vpop.f32.mrb[0].mxu0
  %v423 = vpop.f32.mrb[0].mxu0
  %v424 = vadd.f32 %v137, %v423
  %v425 = vpop.f32.mrb[0].mxu0
  %426 = vmatprep.mubr.bf16.mxu0 0
  %427 = vmatmul.mubr.bf16.gmra.mrb[0].mxu0 %v201
  %v428 = vpop.f32.mrb[0].mxu0
  %v429 = vadd.f32 %v137, %v428
  %v430 = vpop.f32.mrb[0].mxu0
  %v431 = vpop.f32.mrb[0].mxu0
  %v432 = vadd.f32 %v137, %v431
  %v433 = vpop.f32.mrb[0].mxu0
  %434 = vmatprep.mubr.bf16.mxu0 0
  %435 = vmatmul.mubr.bf16.gmra.mrb[0].mxu0 %v204
  %v436 = vpop.f32.mrb[0].mxu0
  %v437 = vadd.f32 %v137, %v436
  %v438 = vpop.f32.mrb[0].mxu0
  %v439 = vpop.f32.mrb[0].mxu0
  %v440 = vadd.f32 %v137, %v439
  %v441 = vpop.f32.mrb[0].mxu0
  %442 = vmatprep.mubr.bf16.mxu0 0
  %443 = vmatmul.mubr.bf16.gmra.mrb[0].mxu0 %v207
  %v444 = vpop.f32.mrb[0].mxu0
  %v445 = vadd.f32 %v137, %v444
  %v446 = vpop.f32.mrb[0].mxu0
  %v447 = vpop.f32.mrb[0].mxu0
  %v448 = vadd.f32 %v137, %v447
  %v449 = vpop.f32.mrb[0].mxu0
  %450 = vmatprep.mubr.bf16.mxu0 0
  %451 = vmatmul.mubr.bf16.gmra.mrb[0].mxu0 %v210
  %v452 = vpop.f32.mrb[0].mxu0
  %v453 = vadd.f32 %v137, %v452
  %v454 = vpop.f32.mrb[0].mxu0
  %v455 = vpop.f32.mrb[0].mxu0
  %v456 = vadd.f32 %v137, %v455
  %v457 = vpop.f32.mrb[0].mxu0
  %458 = vmatprep.mubr.bf16.mxu0 0
  %459 = vmatmul.mubr.bf16.gmra.mrb[0].mxu0 %v213
  %v460 = vpop.f32.mrb[0].mxu0
  %v461 = vadd.f32 %v137, %v460
  %v462 = vpop.f32.mrb[0].mxu0
  %v463 = vpop.f32.mrb[0].mxu0
  %v464 = vadd.f32 %v137, %v463
  %v465 = vpop.f32.mrb[0].mxu0
  %466 = vmatprep.mubr.bf16.mxu0 0
  %467 = vmatmul.mubr.bf16.gmra.mrb[0].mxu0 %v216
  %v468 = vpop.f32.mrb[0].mxu0
  %v469 = vadd.f32 %v137, %v468
  %v470 = vpop.f32.mrb[0].mxu0
  %v471 = vpop.f32.mrb[0].mxu0
  %v472 = vadd.f32 %v137, %v471
  %v473 = vpop.f32.mrb[0].mxu0
  %474 = vmatprep.mubr.bf16.mxu0 0
  %475 = vmatmul.mubr.bf16.gmra.mrb[0].mxu0 %v219
  %v476 = vpop.f32.mrb[0].mxu0
  %v477 = vadd.f32 %v137, %v476
  %v478 = vpop.f32.mrb[0].mxu0
  %v479 = vpop.f32.mrb[0].mxu0
  %v480 = vadd.f32 %v137, %v479
  %v481 = vpop.f32.mrb[0].mxu0
  %482 = vmatprep.mubr.bf16.mxu0 0
  %483 = vmatmul.mubr.bf16.gmra.mrb[0].mxu0 %v222
  %v484 = vpop.f32.mrb[0].mxu0
  %v485 = vadd.f32 %v137, %v484
  %v486 = vpop.f32.mrb[0].mxu0
  %v487 = vpop.f32.mrb[0].mxu0
  %v488 = vadd.f32 %v137, %v487
  %v489 = vpop.f32.mrb[0].mxu0
  %490 = vmatprep.mubr.bf16.mxu0 0
  %491 = vmatmul.mubr.bf16.gmra.mrb[0].mxu0 %v225
  %v492 = vpop.f32.mrb[0].mxu0
  %v493 = vadd.f32 %v137, %v492
  %v494 = vpop.f32.mrb[0].mxu0
  %v495 = vpop.f32.mrb[0].mxu0
  %v496 = vadd.f32 %v137, %v495
  %v497 = vpop.f32.mrb[0].mxu0
  %498 = vmatprep.mubr.bf16.mxu0 0
  %499 = vmatmul.mubr.bf16.gmra.mrb[0].mxu0 %v228
  %v500 = vpop.f32.mrb[0].mxu0
  %v501 = vadd.f32 %v137, %v500
  %v502 = vpop.f32.mrb[0].mxu0
  %v503 = vpop.f32.mrb[0].mxu0
  %v504 = vadd.f32 %v137, %v503
  %v505 = vpop.f32.mrb[0].mxu0
  %506 = vmatprep.mubr.bf16.mxu0 0
  %507 = vmatmul.mubr.bf16.gmra.mrb[0].mxu0 %v231
  %v508 = vpop.f32.mrb[0].mxu0
  %v509 = vadd.f32 %v137, %v508
  %v510 = vpop.f32.mrb[0].mxu0
  %v511 = vpop.f32.mrb[0].mxu0
  %v512 = vadd.f32 %v137, %v511
  %v513 = vpop.f32.mrb[0].mxu0
  %514 = vmatprep.mubr.bf16.mxu0 0
  %515 = vmatmul.mubr.bf16.gmra.mrb[0].mxu0 %v234
  %v516 = vpop.f32.mrb[0].mxu0
  %v517 = vadd.f32 %v137, %v516
  %v518 = vpop.f32.mrb[0].mxu0
  %v519 = vpop.f32.mrb[0].mxu0
  %v520 = vadd.f32 %v137, %v519
  %v521 = vpop.f32.mrb[0].mxu0
  %522 = vmatprep.mubr.bf16.mxu0 0
  %523 = vmatmul.mubr.bf16.gmra.mrb[0].mxu0 %v237
  %v524 = vpop.f32.mrb[0].mxu0
  %v525 = vadd.f32 %v137, %v524
  %v526 = vpop.f32.mrb[0].mxu0
  %v527 = vpop.f32.mrb[0].mxu0
  %v528 = vadd.f32 %v137, %v527
  %v529 = vpop.f32.mrb[0].mxu0
  %530 = vmatprep.mubr.bf16.mxu0 0
  %531 = vmatmul.mubr.bf16.gmra.mrb[0].mxu0 %v240
  %v532 = vpop.f32.mrb[0].mxu0
  %v533 = vadd.f32 %v137, %v532
  %v534 = vpop.f32.mrb[0].mxu0
  %v535 = vpop.f32.mrb[0].mxu0
  %v536 = vadd.f32 %v137, %v535
  %v537 = vpop.f32.mrb[0].mxu0
  %538 = vmatprep.mubr.bf16.mxu0 0
  %539 = vmatmul.mubr.bf16.gmra.mrb[0].mxu0 %v243
  %v540 = vpop.f32.mrb[0].mxu0
  %v541 = vadd.f32 %v137, %v540
  %v542 = vpop.f32.mrb[0].mxu0
  %v543 = vpop.f32.mrb[0].mxu0
  %v544 = vadd.f32 %v137, %v543
  %v545 = vpop.f32.mrb[0].mxu0
  %546 = vmatprep.mubr.bf16.mxu0 0
  %547 = vmatmul.mubr.bf16.gmra.mrb[0].mxu0 %v246
  %v548 = vpop.f32.mrb[0].mxu0
  %v549 = vadd.f32 %v137, %v548
  %v550 = vpop.f32.mrb[0].mxu0
  %v551 = vpop.f32.mrb[0].mxu0
  %v552 = vadd.f32 %v137, %v551
  %v553 = vpop.f32.mrb[0].mxu0
  %554 = vmatprep.mubr.bf16.mxu0 0
  %555 = vmatmul.mubr.bf16.gmra.mrb[0].mxu0 %v249
  %v556 = vpop.f32.mrb[0].mxu0
  %v557 = vadd.f32 %v137, %v556
  %v558 = vpop.f32.mrb[0].mxu0
  %v559 = vpop.f32.mrb[0].mxu0
  %v560 = vadd.f32 %v137, %v559
  %v561 = vpop.f32.mrb[0].mxu0
  %562 = vmatprep.mubr.bf16.mxu0 0
  %563 = vmatmul.mubr.bf16.gmra.mrb[0].mxu0 %v252
  %v564 = vpop.f32.mrb[0].mxu0
  %v565 = vadd.f32 %v137, %v564
  %v566 = vpop.f32.mrb[0].mxu0
  %v567 = vpop.f32.mrb[0].mxu0
  %v568 = vadd.f32 %v137, %v567
  %v569 = vpop.f32.mrb[0].mxu0
  %570 = vmatprep.mubr.bf16.mxu0 0
  %571 = vmatmul.mubr.bf16.gmra.mrb[0].mxu0 %v255
  %v572 = vpop.f32.mrb[0].mxu0
  %v573 = vadd.f32 %v137, %v572
  %v574 = vpop.f32.mrb[0].mxu0
  %v575 = vpop.f32.mrb[0].mxu0
  %v576 = vadd.f32 %v137, %v575
  %v577 = vpop.f32.mrb[0].mxu0
  %578 = vmatprep.mubr.bf16.mxu0 0
  %579 = vmatmul.mubr.bf16.gmra.mrb[0].mxu0 %v258
  %v580 = vpop.f32.mrb[0].mxu0
  %v581 = vadd.f32 %v137, %v580
  %v582 = vpop.f32.mrb[0].mxu0
  %v583 = vpop.f32.mrb[0].mxu0
  %v584 = vadd.f32 %v137, %v583
  %v585 = vpop.f32.mrb[0].mxu0
  %586 = vmatprep.mubr.bf16.mxu0 0
  %587 = vmatmul.mubr.bf16.gmra.mrb[0].mxu0 %v261
  %v588 = vpop.f32.mrb[0].mxu0
  %v589 = vadd.f32 %v137, %v588
  %v590 = vpop.f32.mrb[0].mxu0
  %v591 = vpop.f32.mrb[0].mxu0
  %v592 = vadd.f32 %v137, %v591
  %v593 = vpop.f32.mrb[0].mxu0
  %594 = vmatprep.mubr.bf16.mxu0 0
  %595 = vmatmul.mubr.bf16.gmra.mrb[0].mxu0 %v264
  %v596 = vpop.f32.mrb[0].mxu0
  %v597 = vadd.f32 %v137, %v596
  %v598 = vpop.f32.mrb[0].mxu0
  %v599 = vpop.f32.mrb[0].mxu0
  %v600 = vpop.f32.mrb[0].mxu0
  %601 = vdwg.mxu0
  %602 = vmax.xlane.f32.xlu0 %v301
  %v603 = vpop.xlane.xlu0 %602
  %604 = vmax.xlane.f32.xlu0 %v304
  %v605 = vpop.xlane.xlu0 %604
  %606 = vmax.xlane.f32.xlu0 %v309
  %v607 = vpop.xlane.xlu0 %606
  %608 = vmax.xlane.f32.xlu0 %v312
  %v609 = vpop.xlane.xlu0 %608
  %610 = vmax.xlane.f32.xlu0 %v317
  %v611 = vpop.xlane.xlu0 %610
  %612 = vmax.xlane.f32.xlu0 %v320
  %v613 = vpop.xlane.xlu0 %612
  %614 = vmax.xlane.f32.xlu0 %v325
  %v615 = vpop.xlane.xlu0 %614
  %616 = vmax.xlane.f32.xlu0 %v328
  %v617 = vpop.xlane.xlu0 %616
  %618 = vmax.xlane.f32.xlu0 %v333
  %v619 = vpop.xlane.xlu0 %618
  %620 = vmax.xlane.f32.xlu0 %v336
  %v621 = vpop.xlane.xlu0 %620
  %622 = vmax.xlane.f32.xlu0 %v341
  %v623 = vpop.xlane.xlu0 %622
  %624 = vmax.xlane.f32.xlu0 %v344
  %v625 = vpop.xlane.xlu0 %624
  %626 = vmax.xlane.f32.xlu0 %v349
  %v627 = vpop.xlane.xlu0 %626
  %628 = vmax.xlane.f32.xlu0 %v352
  %v629 = vpop.xlane.xlu0 %628
  %630 = vmax.xlane.f32.xlu0 %v357
  %v631 = vpop.xlane.xlu0 %630
  %632 = vmax.xlane.f32.xlu0 %v360
  %v633 = vpop.xlane.xlu0 %632
  %634 = vmax.xlane.f32.xlu0 %v365
  %v635 = vpop.xlane.xlu0 %634
  %636 = vmax.xlane.f32.xlu0 %v368
  %v637 = vpop.xlane.xlu0 %636
  %638 = vmax.xlane.f32.xlu0 %v373
  %v639 = vpop.xlane.xlu0 %638
  %640 = vmax.xlane.f32.xlu0 %v376
  %v641 = vpop.xlane.xlu0 %640
  %642 = vmax.xlane.f32.xlu0 %v381
  %v643 = vpop.xlane.xlu0 %642
  %644 = vmax.xlane.f32.xlu0 %v384
  %v645 = vpop.xlane.xlu0 %644
  %646 = vmax.xlane.f32.xlu0 %v389
  %v647 = vpop.xlane.xlu0 %646
  %648 = vmax.xlane.f32.xlu0 %v392
  %v649 = vpop.xlane.xlu0 %648
  %650 = vmax.xlane.f32.xlu0 %v397
  %v651 = vpop.xlane.xlu0 %650
  %652 = vmax.xlane.f32.xlu0 %v400
  %v653 = vpop.xlane.xlu0 %652
  %654 = vmax.xlane.f32.xlu0 %v405
  %v655 = vpop.xlane.xlu0 %654
  %656 = vmax.xlane.f32.xlu0 %v408
  %v657 = vpop.xlane.xlu0 %656
  %658 = vmax.xlane.f32.xlu0 %v413
  %v659 = vpop.xlane.xlu0 %658
  %660 = vmax.xlane.f32.xlu0 %v416
  %v661 = vpop.xlane.xlu0 %660
  %662 = vmax.xlane.f32.xlu0 %v421
  %v663 = vpop.xlane.xlu0 %662
  %664 = vmax.xlane.f32.xlu0 %v424
  %v665 = vpop.xlane.xlu0 %664
  %666 = vmax.xlane.f32.xlu0 %v429
  %v667 = vpop.xlane.xlu0 %666
  %668 = vmax.xlane.f32.xlu0 %v432
  %v669 = vpop.xlane.xlu0 %668
  %670 = vmax.xlane.f32.xlu0 %v437
  %v671 = vpop.xlane.xlu0 %670
  %672 = vmax.xlane.f32.xlu0 %v440
  %v673 = vpop.xlane.xlu0 %672
  %674 = vmax.xlane.f32.xlu0 %v445
  %v675 = vpop.xlane.xlu0 %674
  %676 = vmax.xlane.f32.xlu0 %v448
  %v677 = vpop.xlane.xlu0 %676
  %678 = vmax.xlane.f32.xlu0 %v453
  %v679 = vpop.xlane.xlu0 %678
  %680 = vmax.xlane.f32.xlu0 %v456
  %v681 = vpop.xlane.xlu0 %680
  %682 = vmax.xlane.f32.xlu0 %v461
  %v683 = vpop.xlane.xlu0 %682
  %684 = vmax.xlane.f32.xlu0 %v464
  %v685 = vpop.xlane.xlu0 %684
  %686 = vmax.xlane.f32.xlu0 %v469
  %v687 = vpop.xlane.xlu0 %686
  %688 = vmax.xlane.f32.xlu0 %v472
  %v689 = vpop.xlane.xlu0 %688
  %690 = vmax.xlane.f32.xlu0 %v477
  %v691 = vpop.xlane.xlu0 %690
  %692 = vmax.xlane.f32.xlu0 %v480
  %v693 = vpop.xlane.xlu0 %692
  %694 = vmax.xlane.f32.xlu0 %v485
  %v695 = vpop.xlane.xlu0 %694
  %696 = vmax.xlane.f32.xlu0 %v488
  %v697 = vpop.xlane.xlu0 %696
  %698 = vmax.xlane.f32.xlu0 %v493
  %v699 = vpop.xlane.xlu0 %698
  %700 = vmax.xlane.f32.xlu0 %v496
  %v701 = vpop.xlane.xlu0 %700
  %702 = vmax.xlane.f32.xlu0 %v501
  %v703 = vpop.xlane.xlu0 %702
  %704 = vmax.xlane.f32.xlu0 %v504
  %v705 = vpop.xlane.xlu0 %704
  %706 = vmax.xlane.f32.xlu0 %v509
  %v707 = vpop.xlane.xlu0 %706
  %708 = vmax.xlane.f32.xlu0 %v512
  %v709 = vpop.xlane.xlu0 %708
  %710 = vmax.xlane.f32.xlu0 %v517
  %v711 = vpop.xlane.xlu0 %710
  %712 = vmax.xlane.f32.xlu0 %v520
  %v713 = vpop.xlane.xlu0 %712
  %714 = vmax.xlane.f32.xlu0 %v525
  %v715 = vpop.xlane.xlu0 %714
  %716 = vmax.xlane.f32.xlu0 %v528
  %v717 = vpop.xlane.xlu0 %716
  %718 = vmax.xlane.f32.xlu0 %v533
  %v719 = vpop.xlane.xlu0 %718
  %720 = vmax.xlane.f32.xlu0 %v536
  %v721 = vpop.xlane.xlu0 %720
  %722 = vmax.xlane.f32.xlu0 %v541
  %v723 = vpop.xlane.xlu0 %722
  %724 = vmax.xlane.f32.xlu0 %v544
  %v725 = vpop.xlane.xlu0 %724
  %726 = vmax.xlane.f32.xlu0 %v549
  %v727 = vpop.xlane.xlu0 %726
  %728 = vmax.xlane.f32.xlu0 %v552
  %v729 = vpop.xlane.xlu0 %728
  %730 = vmax.xlane.f32.xlu0 %v557
  %v731 = vpop.xlane.xlu0 %730
  %732 = vmax.xlane.f32.xlu0 %v560
  %v733 = vpop.xlane.xlu0 %732
  %734 = vmax.xlane.f32.xlu0 %v565
  %v735 = vpop.xlane.xlu0 %734
  %736 = vmax.xlane.f32.xlu0 %v568
  %v737 = vpop.xlane.xlu0 %736
  %738 = vmax.xlane.f32.xlu0 %v573
  %v739 = vpop.xlane.xlu0 %738
  %740 = vmax.xlane.f32.xlu0 %v576
  %v741 = vpop.xlane.xlu0 %740
  %742 = vmax.xlane.f32.xlu0 %v581
  %v743 = vpop.xlane.xlu0 %742
  %744 = vmax.xlane.f32.xlu0 %v584
  %v745 = vpop.xlane.xlu0 %744
  %746 = vmax.xlane.f32.xlu0 %v589
  %v747 = vpop.xlane.xlu0 %746
  %748 = vmax.xlane.f32.xlu0 %v592
  %v749 = vpop.xlane.xlu0 %748
  %750 = vmax.xlane.f32.xlu0 %v597
  %v751 = vpop.xlane.xlu0 %750
  %v752 = vsub.f32 %v301, %v603
  %v753 = vsub.f32 %v304, %v605
  %v754 = vsub.f32 %v309, %v607
  %v755 = vsub.f32 %v312, %v609
  %v756 = vsub.f32 %v317, %v611
  %v757 = vsub.f32 %v320, %v613
  %v758 = vsub.f32 %v325, %v615
  %v759 = vsub.f32 %v328, %v617
  %v760 = vsub.f32 %v333, %v619
  %v761 = vsub.f32 %v336, %v621
  %v762 = vsub.f32 %v341, %v623
  %v763 = vsub.f32 %v344, %v625
  %v764 = vsub.f32 %v349, %v627
  %v765 = vsub.f32 %v352, %v629
  %v766 = vsub.f32 %v357, %v631
  %v767 = vsub.f32 %v360, %v633
  %v768 = vsub.f32 %v365, %v635
  %v769 = vsub.f32 %v368, %v637
  %v770 = vsub.f32 %v373, %v639
  %v771 = vsub.f32 %v376, %v641
  %v772 = vsub.f32 %v381, %v643
  %v773 = vsub.f32 %v384, %v645
  %v774 = vsub.f32 %v389, %v647
  %v775 = vsub.f32 %v392, %v649
  %v776 = vsub.f32 %v397, %v651
  %v777 = vsub.f32 %v400, %v653
  %v778 = vsub.f32 %v405, %v655
  %v779 = vsub.f32 %v408, %v657
  %v780 = vsub.f32 %v413, %v659
  %v781 = vsub.f32 %v416, %v661
  %v782 = vsub.f32 %v421, %v663
  %v783 = vsub.f32 %v424, %v665
  %v784 = vsub.f32 %v429, %v667
  %v785 = vsub.f32 %v432, %v669
  %v786 = vsub.f32 %v437, %v671
  %v787 = vsub.f32 %v440, %v673
  %v788 = vsub.f32 %v445, %v675
  %v789 = vsub.f32 %v448, %v677
  %v790 = vsub.f32 %v453, %v679
  %v791 = vsub.f32 %v456, %v681
  %v792 = vsub.f32 %v461, %v683
  %v793 = vsub.f32 %v464, %v685
  %v794 = vsub.f32 %v469, %v687
  %v795 = vsub.f32 %v472, %v689
  %v796 = vsub.f32 %v477, %v691
  %v797 = vsub.f32 %v480, %v693
  %v798 = vsub.f32 %v485, %v695
  %v799 = vsub.f32 %v488, %v697
  %v800 = vsub.f32 %v493, %v699
  %v801 = vsub.f32 %v496, %v701
  %v802 = vsub.f32 %v501, %v703
  %v803 = vsub.f32 %v504, %v705
  %v804 = vsub.f32 %v509, %v707
  %v805 = vsub.f32 %v512, %v709
  %v806 = vsub.f32 %v517, %v711
  %v807 = vsub.f32 %v520, %v713
  %v808 = vsub.f32 %v525, %v715
  %v809 = vsub.f32 %v528, %v717
  %v810 = vsub.f32 %v533, %v719
  %v811 = vsub.f32 %v536, %v721
  %v812 = vsub.f32 %v541, %v723
  %v813 = vsub.f32 %v544, %v725
  %v814 = vsub.f32 %v549, %v727
  %v815 = vsub.f32 %v552, %v729
  %v816 = vsub.f32 %v557, %v731
  %v817 = vsub.f32 %v560, %v733
  %v818 = vsub.f32 %v565, %v735
  %v819 = vsub.f32 %v568, %v737
  %v820 = vsub.f32 %v573, %v739
  %v821 = vsub.f32 %v576, %v741
  %v822 = vsub.f32 %v581, %v743
  %v823 = vsub.f32 %v584, %v745
  %v824 = vsub.f32 %v589, %v747
  %v825 = vsub.f32 %v592, %v749
  %v826 = vsub.f32 %v597, %v751
  %v827 = vmul.f32 %v752, 1.442695
  %v828 = vpow.pop %v827
  %v829 = vmul.f32 %v753, 1.442695
  %v830 = vpow.pop %v829
  %v831 = vmul.f32 %v754, 1.442695
  %v832 = vpow.pop %v831
  %v833 = vmul.f32 %v755, 1.442695
  %v834 = vpow.pop %v833
  %v835 = vmul.f32 %v756, 1.442695
  %v836 = vpow.pop %v835
  %v837 = vmul.f32 %v757, 1.442695
  %v838 = vpow.pop %v837
  %v839 = vmul.f32 %v758, 1.442695
  %v840 = vpow.pop %v839
  %v841 = vmul.f32 %v759, 1.442695
  %v842 = vpow.pop %v841
  %v843 = vmul.f32 %v760, 1.442695
  %v844 = vpow.pop %v843
  %v845 = vmul.f32 %v761, 1.442695
  %v846 = vpow.pop %v845
  %v847 = vmul.f32 %v762, 1.442695
  %v848 = vpow.pop %v847
  %v849 = vmul.f32 %v763, 1.442695
  %v850 = vpow.pop %v849
  %v851 = vmul.f32 %v764, 1.442695
  %v852 = vpow.pop %v851
  %v853 = vmul.f32 %v765, 1.442695
  %v854 = vpow.pop %v853
  %v855 = vmul.f32 %v766, 1.442695
  %v856 = vpow.pop %v855
  %v857 = vmul.f32 %v767, 1.442695
  %v858 = vpow.pop %v857
  %v859 = vmul.f32 %v768, 1.442695
  %v860 = vpow.pop %v859
  %v861 = vmul.f32 %v769, 1.442695
  %v862 = vpow.pop %v861
  %v863 = vmul.f32 %v770, 1.442695
  %v864 = vpow.pop %v863
  %v865 = vmul.f32 %v771, 1.442695
  %v866 = vpow.pop %v865
  %v867 = vmul.f32 %v772, 1.442695
  %v868 = vpow.pop %v867
  %v869 = vmul.f32 %v773, 1.442695
  %v870 = vpow.pop %v869
  %v871 = vmul.f32 %v774, 1.442695
  %v872 = vpow.pop %v871
  %v873 = vmul.f32 %v775, 1.442695
  %v874 = vpow.pop %v873
  %v875 = vmul.f32 %v776, 1.442695
  %v876 = vpow.pop %v875
  %v877 = vmul.f32 %v777, 1.442695
  %v878 = vpow.pop %v877
  %v879 = vmul.f32 %v778, 1.442695
  %v880 = vpow.pop %v879
  %v881 = vmul.f32 %v779, 1.442695
  %v882 = vpow.pop %v881
  %v883 = vmul.f32 %v780, 1.442695
  %v884 = vpow.pop %v883
  %v885 = vmul.f32 %v781, 1.442695
  %v886 = vpow.pop %v885
  %v887 = vmul.f32 %v782, 1.442695
  %v888 = vpow.pop %v887
  %v889 = vmul.f32 %v783, 1.442695
  %v890 = vpow.pop %v889
  %v891 = vmul.f32 %v784, 1.442695
  %v892 = vpow.pop %v891
  %v893 = vmul.f32 %v785, 1.442695
  %v894 = vpow.pop %v893
  %v895 = vmul.f32 %v786, 1.442695
  %v896 = vpow.pop %v895
  %v897 = vmul.f32 %v787, 1.442695
  %v898 = vpow.pop %v897
  %v899 = vmul.f32 %v788, 1.442695
  %v900 = vpow.pop %v899
  %v901 = vmul.f32 %v789, 1.442695
  %v902 = vpow.pop %v901
  %v903 = vmul.f32 %v790, 1.442695
  %v904 = vpow.pop %v903
  %v905 = vmul.f32 %v791, 1.442695
  %v906 = vpow.pop %v905
  %v907 = vmul.f32 %v792, 1.442695
  %v908 = vpow.pop %v907
  %v909 = vmul.f32 %v793, 1.442695
  %v910 = vpow.pop %v909
  %v911 = vmul.f32 %v794, 1.442695
  %v912 = vpow.pop %v911
  %v913 = vmul.f32 %v795, 1.442695
  %v914 = vpow.pop %v913
  %v915 = vmul.f32 %v796, 1.442695
  %v916 = vpow.pop %v915
  %v917 = vmul.f32 %v797, 1.442695
  %v918 = vpow.pop %v917
  %v919 = vmul.f32 %v798, 1.442695
  %v920 = vpow.pop %v919
  %v921 = vmul.f32 %v799, 1.442695
  %v922 = vpow.pop %v921
  %v923 = vmul.f32 %v800, 1.442695
  %v924 = vpow.pop %v923
  %v925 = vmul.f32 %v801, 1.442695
  %v926 = vpow.pop %v925
  %v927 = vmul.f32 %v802, 1.442695
  %v928 = vpow.pop %v927
  %v929 = vmul.f32 %v803, 1.442695
  %v930 = vpow.pop %v929
  %v931 = vmul.f32 %v804, 1.442695
  %v932 = vpow.pop %v931
  %v933 = vmul.f32 %v805, 1.442695
  %v934 = vpow.pop %v933
  %v935 = vmul.f32 %v806, 1.442695
  %v936 = vpow.pop %v935
  %v937 = vmul.f32 %v807, 1.442695
  %v938 = vpow.pop %v937
  %v939 = vmul.f32 %v808, 1.442695
  %v940 = vpow.pop %v939
  %v941 = vmul.f32 %v809, 1.442695
  %v942 = vpow.pop %v941
  %v943 = vmul.f32 %v810, 1.442695
  %v944 = vpow.pop %v943
  %v945 = vmul.f32 %v811, 1.442695
  %v946 = vpow.pop %v945
  %v947 = vmul.f32 %v812, 1.442695
  %v948 = vpow.pop %v947
  %v949 = vmul.f32 %v813, 1.442695
  %v950 = vpow.pop %v949
  %v951 = vmul.f32 %v814, 1.442695
  %v952 = vpow.pop %v951
  %v953 = vmul.f32 %v815, 1.442695
  %v954 = vpow.pop %v953
  %v955 = vmul.f32 %v816, 1.442695
  %v956 = vpow.pop %v955
  %v957 = vmul.f32 %v817, 1.442695
  %v958 = vpow.pop %v957
  %v959 = vmul.f32 %v818, 1.442695
  %v960 = vpow.pop %v959
  %v961 = vmul.f32 %v819, 1.442695
  %v962 = vpow.pop %v961
  %v963 = vmul.f32 %v820, 1.442695
  %v964 = vpow.pop %v963
  %v965 = vmul.f32 %v821, 1.442695
  %v966 = vpow.pop %v965
  %v967 = vmul.f32 %v822, 1.442695
  %v968 = vpow.pop %v967
  %v969 = vmul.f32 %v823, 1.442695
  %v970 = vpow.pop %v969
  %v971 = vmul.f32 %v824, 1.442695
  %v972 = vpow.pop %v971
  %v973 = vmul.f32 %v825, 1.442695
  %v974 = vpow.pop %v973
  %v975 = vmul.f32 %v826, 1.442695
  %v976 = vpow.pop %v975
  %977 = vadd.xlane.f32.xlu0 %v828
  %v978 = vpop.xlane.xlu0 %977
  %979 = vadd.xlane.f32.xlu0 %v830
  %v980 = vpop.xlane.xlu0 %979
  %981 = vadd.xlane.f32.xlu0 %v832
  %v982 = vpop.xlane.xlu0 %981
  %983 = vadd.xlane.f32.xlu0 %v834
  %v984 = vpop.xlane.xlu0 %983
  %985 = vadd.xlane.f32.xlu0 %v836
  %v986 = vpop.xlane.xlu0 %985
  %987 = vadd.xlane.f32.xlu0 %v838
  %v988 = vpop.xlane.xlu0 %987
  %989 = vadd.xlane.f32.xlu0 %v840
  %v990 = vpop.xlane.xlu0 %989
  %991 = vadd.xlane.f32.xlu0 %v842
  %v992 = vpop.xlane.xlu0 %991
  %993 = vadd.xlane.f32.xlu0 %v844
  %v994 = vpop.xlane.xlu0 %993
  %995 = vadd.xlane.f32.xlu0 %v846
  %v996 = vpop.xlane.xlu0 %995
  %997 = vadd.xlane.f32.xlu0 %v848
  %v998 = vpop.xlane.xlu0 %997
  %999 = vadd.xlane.f32.xlu0 %v850
  %v1000 = vpop.xlane.xlu0 %999
  %1001 = vadd.xlane.f32.xlu0 %v852
  %v1002 = vpop.xlane.xlu0 %1001
  %1003 = vadd.xlane.f32.xlu0 %v854
  %v1004 = vpop.xlane.xlu0 %1003
  %1005 = vadd.xlane.f32.xlu0 %v856
  %v1006 = vpop.xlane.xlu0 %1005
  %1007 = vadd.xlane.f32.xlu0 %v858
  %v1008 = vpop.xlane.xlu0 %1007
  %1009 = vadd.xlane.f32.xlu0 %v860
  %v1010 = vpop.xlane.xlu0 %1009
  %1011 = vadd.xlane.f32.xlu0 %v862
  %v1012 = vpop.xlane.xlu0 %1011
  %1013 = vadd.xlane.f32.xlu0 %v864
  %v1014 = vpop.xlane.xlu0 %1013
  %1015 = vadd.xlane.f32.xlu0 %v866
  %v1016 = vpop.xlane.xlu0 %1015
  %1017 = vadd.xlane.f32.xlu0 %v868
  %v1018 = vpop.xlane.xlu0 %1017
  %1019 = vadd.xlane.f32.xlu0 %v870
  %v1020 = vpop.xlane.xlu0 %1019
  %1021 = vadd.xlane.f32.xlu0 %v872
  %v1022 = vpop.xlane.xlu0 %1021
  %1023 = vadd.xlane.f32.xlu0 %v874
  %v1024 = vpop.xlane.xlu0 %1023
  %1025 = vadd.xlane.f32.xlu0 %v876
  %v1026 = vpop.xlane.xlu0 %1025
  %1027 = vadd.xlane.f32.xlu0 %v878
  %v1028 = vpop.xlane.xlu0 %1027
  %1029 = vadd.xlane.f32.xlu0 %v880
  %v1030 = vpop.xlane.xlu0 %1029
  %1031 = vadd.xlane.f32.xlu0 %v882
  %v1032 = vpop.xlane.xlu0 %1031
  %1033 = vadd.xlane.f32.xlu0 %v884
  %v1034 = vpop.xlane.xlu0 %1033
  %1035 = vadd.xlane.f32.xlu0 %v886
  %v1036 = vpop.xlane.xlu0 %1035
  %1037 = vadd.xlane.f32.xlu0 %v888
  %v1038 = vpop.xlane.xlu0 %1037
  %1039 = vadd.xlane.f32.xlu0 %v890
  %v1040 = vpop.xlane.xlu0 %1039
  %1041 = vadd.xlane.f32.xlu0 %v892
  %v1042 = vpop.xlane.xlu0 %1041
  %1043 = vadd.xlane.f32.xlu0 %v894
  %v1044 = vpop.xlane.xlu0 %1043
  %1045 = vadd.xlane.f32.xlu0 %v896
  %v1046 = vpop.xlane.xlu0 %1045
  %1047 = vadd.xlane.f32.xlu0 %v898
  %v1048 = vpop.xlane.xlu0 %1047
  %1049 = vadd.xlane.f32.xlu0 %v900
  %v1050 = vpop.xlane.xlu0 %1049
  %1051 = vadd.xlane.f32.xlu0 %v902
  %v1052 = vpop.xlane.xlu0 %1051
  %1053 = vadd.xlane.f32.xlu0 %v904
  %v1054 = vpop.xlane.xlu0 %1053
  %1055 = vadd.xlane.f32.xlu0 %v906
  %v1056 = vpop.xlane.xlu0 %1055
  %1057 = vadd.xlane.f32.xlu0 %v908
  %v1058 = vpop.xlane.xlu0 %1057
  %1059 = vadd.xlane.f32.xlu0 %v910
  %v1060 = vpop.xlane.xlu0 %1059
  %1061 = vadd.xlane.f32.xlu0 %v912
  %v1062 = vpop.xlane.xlu0 %1061
  %1063 = vadd.xlane.f32.xlu0 %v914
  %v1064 = vpop.xlane.xlu0 %1063
  %1065 = vadd.xlane.f32.xlu0 %v916
  %v1066 = vpop.xlane.xlu0 %1065
  %1067 = vadd.xlane.f32.xlu0 %v918
  %v1068 = vpop.xlane.xlu0 %1067
  %1069 = vadd.xlane.f32.xlu0 %v920
  %v1070 = vpop.xlane.xlu0 %1069
  %1071 = vadd.xlane.f32.xlu0 %v922
  %v1072 = vpop.xlane.xlu0 %1071
  %1073 = vadd.xlane.f32.xlu0 %v924
  %v1074 = vpop.xlane.xlu0 %1073
  %1075 = vadd.xlane.f32.xlu0 %v926
  %v1076 = vpop.xlane.xlu0 %1075
  %1077 = vadd.xlane.f32.xlu0 %v928
  %v1078 = vpop.xlane.xlu0 %1077
  %1079 = vadd.xlane.f32.xlu0 %v930
  %v1080 = vpop.xlane.xlu0 %1079
  %1081 = vadd.xlane.f32.xlu0 %v932
  %v1082 = vpop.xlane.xlu0 %1081
  %1083 = vadd.xlane.f32.xlu0 %v934
  %v1084 = vpop.xlane.xlu0 %1083
  %1085 = vadd.xlane.f32.xlu0 %v936
  %v1086 = vpop.xlane.xlu0 %1085
  %1087 = vadd.xlane.f32.xlu0 %v938
  %v1088 = vpop.xlane.xlu0 %1087
  %1089 = vadd.xlane.f32.xlu0 %v940
  %v1090 = vpop.xlane.xlu0 %1089
  %1091 = vadd.xlane.f32.xlu0 %v942
  %v1092 = vpop.xlane.xlu0 %1091
  %1093 = vadd.xlane.f32.xlu0 %v944
  %v1094 = vpop.xlane.xlu0 %1093
  %1095 = vadd.xlane.f32.xlu0 %v946
  %v1096 = vpop.xlane.xlu0 %1095
  %1097 = vadd.xlane.f32.xlu0 %v948
  %v1098 = vpop.xlane.xlu0 %1097
  %1099 = vadd.xlane.f32.xlu0 %v950
  %v1100 = vpop.xlane.xlu0 %1099
  %1101 = vadd.xlane.f32.xlu0 %v952
  %v1102 = vpop.xlane.xlu0 %1101
  %1103 = vadd.xlane.f32.xlu0 %v954
  %v1104 = vpop.xlane.xlu0 %1103
  %1105 = vadd.xlane.f32.xlu0 %v956
  %v1106 = vpop.xlane.xlu0 %1105
  %1107 = vadd.xlane.f32.xlu0 %v958
  %v1108 = vpop.xlane.xlu0 %1107
  %1109 = vadd.xlane.f32.xlu0 %v960
  %v1110 = vpop.xlane.xlu0 %1109
  %1111 = vadd.xlane.f32.xlu0 %v962
  %v1112 = vpop.xlane.xlu0 %1111
  %1113 = vadd.xlane.f32.xlu0 %v964
  %v1114 = vpop.xlane.xlu0 %1113
  %1115 = vadd.xlane.f32.xlu0 %v966
  %v1116 = vpop.xlane.xlu0 %1115
  %1117 = vadd.xlane.f32.xlu0 %v968
  %v1118 = vpop.xlane.xlu0 %1117
  %1119 = vadd.xlane.f32.xlu0 %v970
  %v1120 = vpop.xlane.xlu0 %1119
  %1121 = vadd.xlane.f32.xlu0 %v972
  %v1122 = vpop.xlane.xlu0 %1121
  %1123 = vadd.xlane.f32.xlu0 %v974
  %v1124 = vpop.xlane.xlu0 %1123
  %1125 = vadd.xlane.f32.xlu0 %v976
  %v1126 = vpop.xlane.xlu0 %1125
  %v1127 = vlog2.pop %v978
  %v1128 = vmul.f32 %v1127, 0.6931472
  %v1129 = vlog2.pop %v980
  %v1130 = vmul.f32 %v1129, 0.6931472
  %v1131 = vlog2.pop %v982
  %v1132 = vmul.f32 %v1131, 0.6931472
  %v1133 = vlog2.pop %v984
  %v1134 = vmul.f32 %v1133, 0.6931472
  %v1135 = vlog2.pop %v986
  %v1136 = vmul.f32 %v1135, 0.6931472
  %v1137 = vlog2.pop %v988
  %v1138 = vmul.f32 %v1137, 0.6931472
  %v1139 = vlog2.pop %v990
  %v1140 = vmul.f32 %v1139, 0.6931472
  %v1141 = vlog2.pop %v992
  %v1142 = vmul.f32 %v1141, 0.6931472
  %v1143 = vlog2.pop %v994
  %v1144 = vmul.f32 %v1143, 0.6931472
  %v1145 = vlog2.pop %v996
  %v1146 = vmul.f32 %v1145, 0.6931472
  %v1147 = vlog2.pop %v998
  %v1148 = vmul.f32 %v1147, 0.6931472
  %v1149 = vlog2.pop %v1000
  %v1150 = vmul.f32 %v1149, 0.6931472
  %v1151 = vlog2.pop %v1002
  %v1152 = vmul.f32 %v1151, 0.6931472
  %v1153 = vlog2.pop %v1004
  %v1154 = vmul.f32 %v1153, 0.6931472
  %v1155 = vlog2.pop %v1006
  %v1156 = vmul.f32 %v1155, 0.6931472
  %v1157 = vlog2.pop %v1008
  %v1158 = vmul.f32 %v1157, 0.6931472
  %v1159 = vlog2.pop %v1010
  %v1160 = vmul.f32 %v1159, 0.6931472
  %v1161 = vlog2.pop %v1012
  %v1162 = vmul.f32 %v1161, 0.6931472
  %v1163 = vlog2.pop %v1014
  %v1164 = vmul.f32 %v1163, 0.6931472
  %v1165 = vlog2.pop %v1016
  %v1166 = vmul.f32 %v1165, 0.6931472
  %v1167 = vlog2.pop %v1018
  %v1168 = vmul.f32 %v1167, 0.6931472
  %v1169 = vlog2.pop %v1020
  %v1170 = vmul.f32 %v1169, 0.6931472
  %v1171 = vlog2.pop %v1022
  %v1172 = vmul.f32 %v1171, 0.6931472
  %v1173 = vlog2.pop %v1024
  %v1174 = vmul.f32 %v1173, 0.6931472
  %v1175 = vlog2.pop %v1026
  %v1176 = vmul.f32 %v1175, 0.6931472
  %v1177 = vlog2.pop %v1028
  %v1178 = vmul.f32 %v1177, 0.6931472
  %v1179 = vlog2.pop %v1030
  %v1180 = vmul.f32 %v1179, 0.6931472
  %v1181 = vlog2.pop %v1032
  %v1182 = vmul.f32 %v1181, 0.6931472
  %v1183 = vlog2.pop %v1034
  %v1184 = vmul.f32 %v1183, 0.6931472
  %v1185 = vlog2.pop %v1036
  %v1186 = vmul.f32 %v1185, 0.6931472
  %v1187 = vlog2.pop %v1038
  %v1188 = vmul.f32 %v1187, 0.6931472
  %v1189 = vlog2.pop %v1040
  %v1190 = vmul.f32 %v1189, 0.6931472
  %v1191 = vlog2.pop %v1042
  %v1192 = vmul.f32 %v1191, 0.6931472
  %v1193 = vlog2.pop %v1044
  %v1194 = vmul.f32 %v1193, 0.6931472
  %v1195 = vlog2.pop %v1046
  %v1196 = vmul.f32 %v1195, 0.6931472
  %v1197 = vlog2.pop %v1048
  %v1198 = vmul.f32 %v1197, 0.6931472
  %v1199 = vlog2.pop %v1050
  %v1200 = vmul.f32 %v1199, 0.6931472
  %v1201 = vlog2.pop %v1052
  %v1202 = vmul.f32 %v1201, 0.6931472
  %v1203 = vlog2.pop %v1054
  %v1204 = vmul.f32 %v1203, 0.6931472
  %v1205 = vlog2.pop %v1056
  %v1206 = vmul.f32 %v1205, 0.6931472
  %v1207 = vlog2.pop %v1058
  %v1208 = vmul.f32 %v1207, 0.6931472
  %v1209 = vlog2.pop %v1060
  %v1210 = vmul.f32 %v1209, 0.6931472
  %v1211 = vlog2.pop %v1062
  %v1212 = vmul.f32 %v1211, 0.6931472
  %v1213 = vlog2.pop %v1064
  %v1214 = vmul.f32 %v1213, 0.6931472
  %v1215 = vlog2.pop %v1066
  %v1216 = vmul.f32 %v1215, 0.6931472
  %v1217 = vlog2.pop %v1068
  %v1218 = vmul.f32 %v1217, 0.6931472
  %v1219 = vlog2.pop %v1070
  %v1220 = vmul.f32 %v1219, 0.6931472
  %v1221 = vlog2.pop %v1072
  %v1222 = vmul.f32 %v1221, 0.6931472
  %v1223 = vlog2.pop %v1074
  %v1224 = vmul.f32 %v1223, 0.6931472
  %v1225 = vlog2.pop %v1076
  %v1226 = vmul.f32 %v1225, 0.6931472
  %v1227 = vlog2.pop %v1078
  %v1228 = vmul.f32 %v1227, 0.6931472
  %v1229 = vlog2.pop %v1080
  %v1230 = vmul.f32 %v1229, 0.6931472
  %v1231 = vlog2.pop %v1082
  %v1232 = vmul.f32 %v1231, 0.6931472
  %v1233 = vlog2.pop %v1084
  %v1234 = vmul.f32 %v1233, 0.6931472
  %v1235 = vlog2.pop %v1086
  %v1236 = vmul.f32 %v1235, 0.6931472
  %v1237 = vlog2.pop %v1088
  %v1238 = vmul.f32 %v1237, 0.6931472
  %v1239 = vlog2.pop %v1090
  %v1240 = vmul.f32 %v1239, 0.6931472
  %v1241 = vlog2.pop %v1092
  %v1242 = vmul.f32 %v1241, 0.6931472
  %v1243 = vlog2.pop %v1094
  %v1244 = vmul.f32 %v1243, 0.6931472
  %v1245 = vlog2.pop %v1096
  %v1246 = vmul.f32 %v1245, 0.6931472
  %v1247 = vlog2.pop %v1098
  %v1248 = vmul.f32 %v1247, 0.6931472
  %v1249 = vlog2.pop %v1100
  %v1250 = vmul.f32 %v1249, 0.6931472
  %v1251 = vlog2.pop %v1102
  %v1252 = vmul.f32 %v1251, 0.6931472
  %v1253 = vlog2.pop %v1104
  %v1254 = vmul.f32 %v1253, 0.6931472
  %v1255 = vlog2.pop %v1106
  %v1256 = vmul.f32 %v1255, 0.6931472
  %v1257 = vlog2.pop %v1108
  %v1258 = vmul.f32 %v1257, 0.6931472
  %v1259 = vlog2.pop %v1110
  %v1260 = vmul.f32 %v1259, 0.6931472
  %v1261 = vlog2.pop %v1112
  %v1262 = vmul.f32 %v1261, 0.6931472
  %v1263 = vlog2.pop %v1114
  %v1264 = vmul.f32 %v1263, 0.6931472
  %v1265 = vlog2.pop %v1116
  %v1266 = vmul.f32 %v1265, 0.6931472
  %v1267 = vlog2.pop %v1118
  %v1268 = vmul.f32 %v1267, 0.6931472
  %v1269 = vlog2.pop %v1120
  %v1270 = vmul.f32 %v1269, 0.6931472
  %v1271 = vlog2.pop %v1122
  %v1272 = vmul.f32 %v1271, 0.6931472
  %v1273 = vlog2.pop %v1124
  %v1274 = vmul.f32 %v1273, 0.6931472
  %v1275 = vlog2.pop %v1126
  %v1276 = vmul.f32 %v1275, 0.6931472
  %v1277 = vsub.f32 %v752, %v1128
  %v1278 = vsub.f32 %v753, %v1130
  %v1279 = vsub.f32 %v754, %v1132
  %v1280 = vsub.f32 %v755, %v1134
  %v1281 = vsub.f32 %v756, %v1136
  %v1282 = vsub.f32 %v757, %v1138
  %v1283 = vsub.f32 %v758, %v1140
  %v1284 = vsub.f32 %v759, %v1142
  %v1285 = vsub.f32 %v760, %v1144
  %v1286 = vsub.f32 %v761, %v1146
  %v1287 = vsub.f32 %v762, %v1148
  %v1288 = vsub.f32 %v763, %v1150
  %v1289 = vsub.f32 %v764, %v1152
  %v1290 = vsub.f32 %v765, %v1154
  %v1291 = vsub.f32 %v766, %v1156
  %v1292 = vsub.f32 %v767, %v1158
  %v1293 = vsub.f32 %v768, %v1160
  %v1294 = vsub.f32 %v769, %v1162
  %v1295 = vsub.f32 %v770, %v1164
  %v1296 = vsub.f32 %v771, %v1166
  %v1297 = vsub.f32 %v772, %v1168
  %v1298 = vsub.f32 %v773, %v1170
  %v1299 = vsub.f32 %v774, %v1172
  %v1300 = vsub.f32 %v775, %v1174
  %v1301 = vsub.f32 %v776, %v1176
  %v1302 = vsub.f32 %v777, %v1178
  %v1303 = vsub.f32 %v778, %v1180
  %v1304 = vsub.f32 %v779, %v1182
  %v1305 = vsub.f32 %v780, %v1184
  %v1306 = vsub.f32 %v781, %v1186
  %v1307 = vsub.f32 %v782, %v1188
  %v1308 = vsub.f32 %v783, %v1190
  %v1309 = vsub.f32 %v784, %v1192
  %v1310 = vsub.f32 %v785, %v1194
  %v1311 = vsub.f32 %v786, %v1196
  %v1312 = vsub.f32 %v787, %v1198
  %v1313 = vsub.f32 %v788, %v1200
  %v1314 = vsub.f32 %v789, %v1202
  %v1315 = vsub.f32 %v790, %v1204
  %v1316 = vsub.f32 %v791, %v1206
  %v1317 = vsub.f32 %v792, %v1208
  %v1318 = vsub.f32 %v793, %v1210
  %v1319 = vsub.f32 %v794, %v1212
  %v1320 = vsub.f32 %v795, %v1214
  %v1321 = vsub.f32 %v796, %v1216
  %v1322 = vsub.f32 %v797, %v1218
  %v1323 = vsub.f32 %v798, %v1220
  %v1324 = vsub.f32 %v799, %v1222
  %v1325 = vsub.f32 %v800, %v1224
  %v1326 = vsub.f32 %v801, %v1226
  %v1327 = vsub.f32 %v802, %v1228
  %v1328 = vsub.f32 %v803, %v1230
  %v1329 = vsub.f32 %v804, %v1232
  %v1330 = vsub.f32 %v805, %v1234
  %v1331 = vsub.f32 %v806, %v1236
  %v1332 = vsub.f32 %v807, %v1238
  %v1333 = vsub.f32 %v808, %v1240
  %v1334 = vsub.f32 %v809, %v1242
  %v1335 = vsub.f32 %v810, %v1244
  %v1336 = vsub.f32 %v811, %v1246
  %v1337 = vsub.f32 %v812, %v1248
  %v1338 = vsub.f32 %v813, %v1250
  %v1339 = vsub.f32 %v814, %v1252
  %v1340 = vsub.f32 %v815, %v1254
  %v1341 = vsub.f32 %v816, %v1256
  %v1342 = vsub.f32 %v817, %v1258
  %v1343 = vsub.f32 %v818, %v1260
  %v1344 = vsub.f32 %v819, %v1262
  %v1345 = vsub.f32 %v820, %v1264
  %v1346 = vsub.f32 %v821, %v1266
  %v1347 = vsub.f32 %v822, %v1268
  %v1348 = vsub.f32 %v823, %v1270
  %v1349 = vsub.f32 %v824, %v1272
  %v1350 = vsub.f32 %v825, %v1274
  %v1351 = vsub.f32 %v826, %v1276
  %1352 = vst [vmem:[%s3] sm:$0xff] %v1277
  %1353 = vst [vmem:[%s3 + $0x8] sm:$0xff] %v1278
  %1354 = vst [vmem:[%s3 + $0x10] sm:$0xff] %v1279
  %1355 = vst [vmem:[%s3 + $0x18] sm:$0xff] %v1280
  %1356 = vst [vmem:[%s3 + $0x20] sm:$0xff] %v1281
  %1357 = vst [vmem:[%s3 + $0x28] sm:$0xff] %v1282
  %1358 = vst [vmem:[%s3 + $0x30] sm:$0xff] %v1283
  %1359 = vst [vmem:[%s3 + $0x38] sm:$0xff] %v1284
  %1360 = vst [vmem:[%s3 + $0x40] sm:$0xff] %v1285
  %1361 = vst [vmem:[%s3 + $0x48] sm:$0xff] %v1286
  %1362 = vst [vmem:[%s3 + $0x50] sm:$0xff] %v1287
  %1363 = vst [vmem:[%s3 + $0x58] sm:$0xff] %v1288
  %1364 = vst [vmem:[%s3 + $0x60] sm:$0xff] %v1289
  %1365 = vst [vmem:[%s3 + $0x68] sm:$0xff] %v1290
  %1366 = vst [vmem:[%s3 + $0x70] sm:$0xff] %v1291
  %1367 = vst [vmem:[%s3 + $0x78] sm:$0xff] %v1292
  %1368 = vst [vmem:[%s3 + $0x80] sm:$0xff] %v1293
  %1369 = vst [vmem:[%s3 + $0x88] sm:$0xff] %v1294
  %1370 = vst [vmem:[%s3 + $0x90] sm:$0xff] %v1295
  %1371 = vst [vmem:[%s3 + $0x98] sm:$0xff] %v1296
  %1372 = vst [vmem:[%s3 + $0xa0] sm:$0xff] %v1297
  %1373 = vst [vmem:[%s3 + $0xa8] sm:$0xff] %v1298
  %1374 = vst [vmem:[%s3 + $0xb0] sm:$0xff] %v1299
  %1375 = vst [vmem:[%s3 + $0xb8] sm:$0xff] %v1300
  %1376 = vst [vmem:[%s3 + $0xc0] sm:$0xff] %v1301
  %1377 = vst [vmem:[%s3 + $0xc8] sm:$0xff] %v1302
  %1378 = vst [vmem:[%s3 + $0xd0] sm:$0xff] %v1303
  %1379 = vst [vmem:[%s3 + $0xd8] sm:$0xff] %v1304
  %1380 = vst [vmem:[%s3 + $0xe0] sm:$0xff] %v1305
  %1381 = vst [vmem:[%s3 + $0xe8] sm:$0xff] %v1306
  %1382 = vst [vmem:[%s3 + $0xf0] sm:$0xff] %v1307
  %1383 = vst [vmem:[%s3 + $0xf8] sm:$0xff] %v1308
  %1384 = vst [vmem:[%s3 + $0x100] sm:$0xff] %v1309
  %1385 = vst [vmem:[%s3 + $0x108] sm:$0xff] %v1310
  %1386 = vst [vmem:[%s3 + $0x110] sm:$0xff] %v1311
  %1387 = vst [vmem:[%s3 + $0x118] sm:$0xff] %v1312
  %1388 = vst [vmem:[%s3 + $0x120] sm:$0xff] %v1313
  %1389 = vst [vmem:[%s3 + $0x128] sm:$0xff] %v1314
  %1390 = vst [vmem:[%s3 + $0x130] sm:$0xff] %v1315
  %1391 = vst [vmem:[%s3 + $0x138] sm:$0xff] %v1316
  %1392 = vst [vmem:[%s3 + $0x140] sm:$0xff] %v1317
  %1393 = vst [vmem:[%s3 + $0x148] sm:$0xff] %v1318
  %1394 = vst [vmem:[%s3 + $0x150] sm:$0xff] %v1319
  %1395 = vst [vmem:[%s3 + $0x158] sm:$0xff] %v1320
  %1396 = vst [vmem:[%s3 + $0x160] sm:$0xff] %v1321
  %1397 = vst [vmem:[%s3 + $0x168] sm:$0xff] %v1322
  %1398 = vst [vmem:[%s3 + $0x170] sm:$0xff] %v1323
  %1399 = vst [vmem:[%s3 + $0x178] sm:$0xff] %v1324
  %1400 = vst [vmem:[%s3 + $0x180] sm:$0xff] %v1325
  %1401 = vst [vmem:[%s3 + $0x188] sm:$0xff] %v1326
  %1402 = vst [vmem:[%s3 + $0x190] sm:$0xff] %v1327
  %1403 = vst [vmem:[%s3 + $0x198] sm:$0xff] %v1328
  %1404 = vst [vmem:[%s3 + $0x1a0] sm:$0xff] %v1329
  %1405 = vst [vmem:[%s3 + $0x1a8] sm:$0xff] %v1330
  %1406 = vst [vmem:[%s3 + $0x1b0] sm:$0xff] %v1331
  %1407 = vst [vmem:[%s3 + $0x1b8] sm:$0xff] %v1332
  %1408 = vst [vmem:[%s3 + $0x1c0] sm:$0xff] %v1333
  %1409 = vst [vmem:[%s3 + $0x1c8] sm:$0xff] %v1334
  %1410 = vst [vmem:[%s3 + $0x1d0] sm:$0xff] %v1335
  %1411 = vst [vmem:[%s3 + $0x1d8] sm:$0xff] %v1336
  %1412 = vst [vmem:[%s3 + $0x1e0] sm:$0xff] %v1337
  %1413 = vst [vmem:[%s3 + $0x1e8] sm:$0xff] %v1338
  %1414 = vst [vmem:[%s3 + $0x1f0] sm:$0xff] %v1339
  %1415 = vst [vmem:[%s3 + $0x1f8] sm:$0xff] %v1340
  %1416 = vst [vmem:[%s3 + $0x200] sm:$0xff] %v1341
  %1417 = vst [vmem:[%s3 + $0x208] sm:$0xff] %v1342
  %1418 = vst [vmem:[%s3 + $0x210] sm:$0xff] %v1343
  %1419 = vst [vmem:[%s3 + $0x218] sm:$0xff] %v1344
  %1420 = vst [vmem:[%s3 + $0x220] sm:$0xff] %v1345
  %1421 = vst [vmem:[%s3 + $0x228] sm:$0xff] %v1346
  %1422 = vst [vmem:[%s3 + $0x230] sm:$0xff] %v1347
  %1423 = vst [vmem:[%s3 + $0x238] sm:$0xff] %v1348
  %1424 = vst [vmem:[%s3 + $0x240] sm:$0xff] %v1349
  %1425 = vst [vmem:[%s3 + $0x248] sm:$0xff] %v1350
  %1426 = vst [vmem:[%s3 + $0x250] sm:$0xff] %v1351
  // Predicated region
  $region14: #{decoder_forward.1} parent=0 // pred_check
    _
  $region15: #{decoder_forward.1} parent=0 // pred_check_branch
    %1428 = sbr.rel (0) target = $region17
  $region16: #{decoder_forward.1} parent=0 // pred_region
    _
  $region17: #{decoder_forward.1} parent=0 // pred_fallthru
    _
  // Predicated region
  $region18: #{decoder_forward.1} parent=0 // pred_check
    _
  $region19: #{decoder_forward.1} parent=0 // pred_check_branch
    %1430 = sbr.rel (0) target = $region21
  $region20: #{decoder_forward.1} parent=0 // pred_region
    _
  $region21: #{decoder_forward.1} parent=0 // pred_fallthru
    _

</llo_original>
